<compile_context>
chip_gen: v7x
topology: tpu7x:2x2x1
jax: 0.10.0
libtpu: 0.0.40
codegen_flags: <defaults>
</compile_context>

<pallas_src>
import functools
import math

import jax
import jax.numpy as jnp
from jax.experimental import pallas as pl
from jax.experimental.pallas import tpu as pltpu


def _round_up(x, m):
    return ((x + m - 1) // m) * m


def _vmem_limit_bytes(required):
    """Per-generation VMEM cap: ~3/4 of physical (≈96 MiB on v5e/v6e, ≈48 MiB on
    v7x); conservative 48 MiB fallback if the hardware query is unavailable."""
    cap = 48 << 20
    try:
        phys = getattr(pltpu.get_tpu_info(), "vmem_capacity_bytes", None)
        if phys:
            cap = (int(phys) * 3) // 4
    except Exception:
        pass
    return int(min(max(required + (8 << 20), 32 << 20), cap))


def _choose_final_tiling(k_last, out_dim, w_itemsize, *, target_tile_bytes=4 << 20,
                         max_tile_bytes=16 << 20, max_steps=32, lane_quantum=512):
    """Pick the out_features tile (tn) of the streamed final Linear.

    tn is a multiple of 512 lanes; each grid step streams ~target_tile_bytes of
    weight, the step count is bounded (per-step overhead ~0.35 us), and we
    prefer >=2 steps so both v7x TensorCores get a share of the stream.
    """
    n_ceil = _round_up(out_dim, lane_quantum)
    row_bytes = max(k_last * w_itemsize, 1)
    tn = (target_tile_bytes // row_bytes) // lane_quantum * lane_quantum
    tn_cap = (max_tile_bytes // (2 * row_bytes)) // lane_quantum * lane_quantum
    tn = max(lane_quantum, min(tn, max(tn_cap, lane_quantum), n_ceil))
    if n_ceil // tn > max_steps:                      # too many tiny steps
        tn = min(n_ceil, _round_up(-(-n_ceil // max_steps), lane_quantum))
    if tn >= n_ceil and out_dim > lane_quantum:       # v7x: give each TC a tile
        tn = _round_up(-(-n_ceil // 2), lane_quantum)
    n_pad = _round_up(out_dim, tn)
    return tn, n_pad, n_pad // tn


# ---------------------------------------------------------------------------
# Kernels: streamed GEMM over the final Linear's out_features tiles.
# ---------------------------------------------------------------------------

def _streamed_gemm_int8_kernel(h_ref, w_ref, s_ref, b_ref, out_ref):
    # h_ref: [b_pad, K] bf16 (grid-invariant), w_ref: [1, K, tn] int8 (streamed),
    # s_ref/b_ref: [1, 1, tn] f32, out_ref: [b_pad, tn] f32.
    # int8 -> f32 -> bf16 cast is exact for |q| <= 127; MXU bf16 matmul with f32
    # accumulation; per-output-channel scale folded into the tiny f32 accumulator.
    w = w_ref[0].astype(jnp.float32).astype(jnp.bfloat16)
    acc = jnp.dot(h_ref[...], w, preferred_element_type=jnp.float32)
    out_ref[...] = acc * s_ref[0] + b_ref[0]


def _streamed_gemm_bf16_kernel(h_ref, w_ref, b_ref, out_ref):
    acc = jnp.dot(h_ref[...], w_ref[0], preferred_element_type=jnp.float32)
    out_ref[...] = acc + b_ref[0]


# ---------------------------------------------------------------------------
# Parameter preparation (done once, outside the forward).
# ---------------------------------------------------------------------------

def prepare_gene_decoder(params, *, weight_format="int8",
                         target_tile_bytes=4 << 20, max_steps=32):
    """Casts hidden layers to bf16 and re-layouts the final Linear once into
    contiguous [grid_n, K, tn] weight tiles (int8 per-output-channel by default).

    params: list of (W[in, out] f32, b[1, out] f32) per Linear, already in the
            "reversed hidden sizes" order GeneDecoder.__init__ builds.
    Returns (arrays, eff_params, config).  eff_params are f32 weights with the
    quantization folded in, for building a directly comparable reference.
    """
    assert weight_format in ("int8", "bf16")
    hidden = [(w.astype(jnp.bfloat16), b.reshape(1, -1).astype(jnp.float32))
              for w, b in params[:-1]]
    w_last, b_last = params[-1]
    w_last = w_last.astype(jnp.float32)
    b_last = b_last.reshape(1, -1).astype(jnp.float32)
    k_last, out_dim = w_last.shape

    itemsize = 1 if weight_format == "int8" else 2
    tn, n_pad, grid_n = _choose_final_tiling(
        k_last, out_dim, itemsize,
        target_tile_bytes=target_tile_bytes, max_steps=max_steps)
    k_align = 32 if weight_format == "int8" else 16     # packed sublane tiling
    k_pad = _round_up(k_last, k_align)

    w = jnp.pad(w_last, ((0, k_pad - k_last), (0, n_pad - out_dim)))
    b = jnp.pad(b_last, ((0, 0), (0, n_pad - out_dim)))

    if weight_format == "int8":
        amax = jnp.max(jnp.abs(w), axis=0, keepdims=True)                 # [1, n_pad]
        scale = jnp.where(amax > 0.0, amax / 127.0, 1.0).astype(jnp.float32)
        q = jnp.clip(jnp.round(w / scale), -127.0, 127.0).astype(jnp.int8)
        w_tiles = q.reshape(k_pad, grid_n, tn).transpose(1, 0, 2)         # contiguous slabs
        scale_tiles = scale.reshape(1, grid_n, tn).transpose(1, 0, 2)
        w_eff = (q.astype(jnp.float32) * scale)[:k_last, :out_dim]
    else:
        w_bf16 = w.astype(jnp.bfloat16)
        w_tiles = w_bf16.reshape(k_pad, grid_n, tn).transpose(1, 0, 2)
        scale_tiles = None
        w_eff = w_bf16.astype(jnp.float32)[:k_last, :out_dim]

    b_tiles = b.reshape(1, grid_n, tn).transpose(1, 0, 2)

    eff_params = [(hw.astype(jnp.float32), hb) for hw, hb in hidden] + [(w_eff, b_last)]
    arrays = {"hidden": hidden, "w_tiles": w_tiles,
              "scale_tiles": scale_tiles, "bias_tiles": b_tiles}
    config = {"weight_format": weight_format, "k_last": k_last, "k_pad": k_pad,
              "out_dim": out_dim, "n_pad": n_pad, "tn": tn, "grid_n": grid_n}
    return arrays, eff_params, config


# ---------------------------------------------------------------------------
# Forward pass.
# ---------------------------------------------------------------------------

def gene_decoder_forward(latent_z, arrays, config):
    """GeneDecoder forward: hidden stack in XLA, final Linear as a Pallas streamed GEMM."""
    batch = latent_z.shape[0]
    k_last, k_pad = config["k_last"], config["k_pad"]
    out_dim, n_pad = config["out_dim"], config["n_pad"]
    tn, grid_n = config["tn"], config["grid_n"]
    quant = config["weight_format"] == "int8"

    # Pad batch to the bf16 sublane packing (16 rows) -> unmasked, fully packed vregs.
    b_pad = max(16, _round_up(batch, 16))
    z = latent_z
    if b_pad != batch:
        z = jnp.pad(z, ((0, b_pad - batch), (0, 0)))

    # Hidden stack (tiny) once in plain XLA: bf16 x bf16 MXU matmuls, f32 bias+ReLU.
    h = z
    for w, b in arrays["hidden"]:
        h = jnp.dot(h.astype(jnp.bfloat16), w, preferred_element_type=jnp.float32)
        h = jnp.maximum(h + b, 0.0)
        # TODO(synk): train-mode dropout (RNG mask) not implemented (inference identity).
    h = h.astype(jnp.bfloat16)
    if k_pad != k_last:
        h = jnp.pad(h, ((0, 0), (0, k_pad - k_last)))

    w_tiles = arrays["w_tiles"]
    b_tiles = arrays["bias_tiles"]
    w_itemsize = w_tiles.dtype.itemsize

    in_flat = [h, w_tiles]
    in_specs = [pl.BlockSpec((b_pad, k_pad), lambda j: (0, 0)),
                pl.BlockSpec((1, k_pad, tn), lambda j: (j, 0, 0))]
    if quant:
        in_flat.append(arrays["scale_tiles"])
        in_specs.append(pl.BlockSpec((1, 1, tn), lambda j: (j, 0, 0)))
    in_flat.append(b_tiles)
    in_specs.append(pl.BlockSpec((1, 1, tn), lambda j: (j, 0, 0)))
    out_spec = pl.BlockSpec((b_pad, tn), lambda j: (0, j))

    # Honest VMEM estimate: Pallas double-buffers every grid-spec input by default.
    est = 2 * b_pad * k_pad * 2                        # h (bf16, grid-invariant)
    est += 2 * k_pad * tn * w_itemsize                 # streamed weight tile
    est += (2 + (2 if quant else 0)) * tn * 4          # bias (+ scale) tiles
    est += 2 * b_pad * tn * 4                          # output tile
    vmem_limit = _vmem_limit_bytes(est)

    flops = 2 * b_pad * k_pad * n_pad
    bytes_accessed = (w_tiles.size * w_itemsize + b_tiles.size * 4
                      + (arrays["scale_tiles"].size * 4 if quant else 0)
                      + h.size * 2 + b_pad * n_pad * 4)
    cost = pl.CostEstimate(flops=int(flops), transcendentals=0,
                           bytes_accessed=int(bytes_accessed))

    kernel = _streamed_gemm_int8_kernel if quant else _streamed_gemm_bf16_kernel
    out = pl.pallas_call(
        kernel,
        out_shape=jax.ShapeDtypeStruct((b_pad, n_pad), jnp.float32),
        grid=(grid_n,),
        in_specs=in_specs,
        out_specs=out_spec,
        compiler_params=pltpu.CompilerParams(
            dimension_semantics=("parallel",),   # reduction-free axis; v7x megacore
            vmem_limit_bytes=vmem_limit),
        cost_estimate=cost,
    )(*in_flat)

    return out[:batch, :out_dim]


# ---------------------------------------------------------------------------
# Init + reference.
# ---------------------------------------------------------------------------

def init_gene_decoder_params(key, latent_size, hidden_sizes, output_size):
    """nn.Linear-style init (U(-k, k), k = 1/sqrt(fan_in)).

    hidden_sizes is reversed here, exactly as GeneDecoder.__init__ does.
    Weights returned as [in, out] (PyTorch W.T) f32; biases [1, out] f32.
    """
    hidden_rev = list(reversed(hidden_sizes))
    num_units = [latent_size] + hidden_rev + [output_size]
    params = []
    for idx in range(1, len(num_units)):
        fan_in, fan_out = num_units[idx - 1], num_units[idx]
        k = 1.0 / math.sqrt(fan_in)
        key, kw, kb = jax.random.split(key, 3)
        w = jax.random.uniform(kw, (fan_in, fan_out), jnp.float32, -k, k)
        b = jax.random.uniform(kb, (1, fan_out), jnp.float32, -k, k)
        params.append((w, b))
    return params


def reference_forward(latent_z, eff_params):
    """Pure-JAX f32 reference using the effective (quantization-folded) weights."""
    h = latent_z
    for i, (w, b) in enumerate(eff_params):
        h = h @ w + b
        if i < len(eff_params) - 1:
            h = jnp.maximum(h, 0.0)
    return h


if __name__ == "__main__":
    # Shapes consistent with the module's forward: latent_z is [B, latent].
    batch = 2
    latent_size = 16
    hidden_sizes = [64, 32]   # GeneDecoder reverses this -> [32, 64]
    output_size = 978         # gene count; tiled internally as 2 x 512-lane slabs
    dropout = 0.1             # inference: identity

    key = jax.random.PRNGKey(0)
    k_params, k_z = jax.random.split(key)
    params = init_gene_decoder_params(k_params, latent_size, hidden_sizes, output_size)
    latent_z = jax.random.normal(k_z, (batch, latent_size), jnp.float32)

    arrays, eff_params, config = prepare_gene_decoder(params, weight_format="int8")
    fwd = jax.jit(functools.partial(gene_decoder_forward, config=config))
    out = jax.block_until_ready(fwd(latent_z, arrays))

    ref = reference_forward(latent_z, eff_params)
    assert out.shape == (batch, output_size)
    # eff_params already fold in bf16/int8 weight rounding, so the tolerance only
    # covers bf16 activation casts + MXU rounding vs the f32 reference.
    assert jnp.allclose(out, ref, atol=2e-2, rtol=2e-2), "mismatch vs reference"

    print("KERNEL_OK")
</pallas_src>

<mosaic_0001>
module attributes {stable_mosaic.version = 11 : i64} {
  func.func @_streamed_gemm_int8_kernel(%arg0: i32, %arg1: memref<16x64xbf16, #tpu.memory_space<vmem>>, %arg2: memref<1x64x512xi8, #tpu.memory_space<vmem>>, %arg3: memref<1x1x512xf32, #tpu.memory_space<vmem>>, %arg4: memref<1x1x512xf32, #tpu.memory_space<vmem>>, %arg5: memref<16x512xf32, #tpu.memory_space<vmem>>) attributes {dimension_semantics = [#tpu.dimension_semantics<parallel>], iteration_bounds = array<i64: 2>, scalar_prefetch = 0 : i64, scratch_operands = 0 : i64, tpu.core_type = #tpu.core_type<tc>, window_params = [{pipeline_mode = #tpu.pipeline_mode<synchronous>, transform_indices = @transform_0, window_bounds = array<i64: 16, 64>}, {transform_indices = @transform_1, window_bounds = array<i64: 1, 64, 512>}, {transform_indices = @transform_2, window_bounds = array<i64: 1, 1, 512>}, {transform_indices = @transform_3, window_bounds = array<i64: 1, 1, 512>}, {transform_indices = @transform_4, window_bounds = array<i64: 16, 512>}]} {
    %c0 = arith.constant 0 : index
    %c0_0 = arith.constant 0 : index
    %c0_1 = arith.constant 0 : index
    %0 = vector.load %arg2[%c0, %c0_0, %c0_1] : memref<1x64x512xi8, #tpu.memory_space<vmem>>, vector<1x64x512xi8>
    %1 = vector.shape_cast %0 : vector<1x64x512xi8> to vector<64x512xi8>
    %2 = arith.sitofp %1 : vector<64x512xi8> to vector<64x512xf32>
    %3 = arith.truncf %2 : vector<64x512xf32> to vector<64x512xbf16>
    %c0_2 = arith.constant 0 : index
    %c0_3 = arith.constant 0 : index
    %4 = vector.load %arg1[%c0_2, %c0_3] : memref<16x64xbf16, #tpu.memory_space<vmem>>, vector<16x64xbf16>
    %cst = arith.constant dense<0.000000e+00> : vector<16x512xf32>
    %5 = tpu.matmul %4, %3, %cst {dimension_numbers = #tpu.dot_dimension_numbers<[1], [0], [0], [1], [0, 0, 1, 1], [], []>} : vector<16x64xbf16>, vector<64x512xbf16>, vector<16x512xf32> -> vector<16x512xf32>
    %c0_4 = arith.constant 0 : index
    %c0_5 = arith.constant 0 : index
    %c0_6 = arith.constant 0 : index
    %6 = vector.load %arg3[%c0_4, %c0_5, %c0_6] : memref<1x1x512xf32, #tpu.memory_space<vmem>>, vector<1x1x512xf32>
    %7 = vector.shape_cast %6 : vector<1x1x512xf32> to vector<1x512xf32>
    %8 = vector.broadcast %7 : vector<1x512xf32> to vector<16x512xf32>
    %9 = arith.mulf %5, %8 : vector<16x512xf32>
    %c0_7 = arith.constant 0 : index
    %c0_8 = arith.constant 0 : index
    %c0_9 = arith.constant 0 : index
    %10 = vector.load %arg4[%c0_7, %c0_8, %c0_9] : memref<1x1x512xf32, #tpu.memory_space<vmem>>, vector<1x1x512xf32>
    %11 = vector.shape_cast %10 : vector<1x1x512xf32> to vector<1x512xf32>
    %12 = vector.broadcast %11 : vector<1x512xf32> to vector<16x512xf32>
    %13 = arith.addf %9, %12 : vector<16x512xf32>
    %c0_10 = arith.constant 0 : index
    %c0_11 = arith.constant 0 : index
    %14 = vector.load %arg5[%c0_10, %c0_11] : memref<16x512xf32, #tpu.memory_space<vmem>>, vector<16x512xf32>
    tpu.vector_store %arg5[%c0_10, %c0_11], %13 {strides = array<i32>} : memref<16x512xf32, #tpu.memory_space<vmem>>, vector<16x512xf32>,
    return
  }
  func.func @transform_0(%arg0: i32) -> (i32, i32) {
    %c0_i32 = arith.constant 0 : i32
    %c0_i32_0 = arith.constant 0 : i32
    %c0_i32_1 = arith.constant 0 : i32
    return %c0_i32, %c0_i32_0 : i32, i32
  }
  func.func @transform_1(%arg0: i32) -> (i32, i32, i32) {
    %c0_i32 = arith.constant 0 : i32
    %c0_i32_0 = arith.constant 0 : i32
    %c0_i32_1 = arith.constant 0 : i32
    return %arg0, %c0_i32, %c0_i32_0 : i32, i32, i32
  }
  func.func @transform_2(%arg0: i32) -> (i32, i32, i32) {
    %c0_i32 = arith.constant 0 : i32
    %c0_i32_0 = arith.constant 0 : i32
    %c0_i32_1 = arith.constant 0 : i32
    return %arg0, %c0_i32, %c0_i32_0 : i32, i32, i32
  }
  func.func @transform_3(%arg0: i32) -> (i32, i32, i32) {
    %c0_i32 = arith.constant 0 : i32
    %c0_i32_0 = arith.constant 0 : i32
    %c0_i32_1 = arith.constant 0 : i32
    return %arg0, %c0_i32, %c0_i32_0 : i32, i32, i32
  }
  func.func @transform_4(%arg0: i32) -> (i32, i32) {
    %c0_i32 = arith.constant 0 : i32
    %c0_i32_0 = arith.constant 0 : i32
    return %c0_i32, %arg0 : i32, i32
  }
}

</mosaic_0001>

<llo_original>
// kernel: gene_decoder_forward.1
$region0: #{gene_decoder_forward.1}
  #allocation0 [shape = 'u32[]', space=smem, size = 0x4, offset = 0x4, fixed_abs, tag = 'smem constant byte address 0x4 - core index']
  #allocation1 [shape = 'u32[144,128]{1,0:T(1,128)}', space=vmem, size = 0x12000, scoped, tag = 'internal scratch']
  %s0 = inlined_call_operand.vmem [shape: bf16[16,64], index: 0, kind: input, shape index: {}]
  %s1 = inlined_call_operand.hbm [shape: s8[2,64,512], index: 1, kind: input, shape index: {}]
  %s2 = inlined_call_operand.vmem [shape: f32[2,1,512], index: 2, kind: input, shape index: {}]
  %s3 = inlined_call_operand.vmem [shape: f32[2,1,512], index: 3, kind: input, shape index: {}]
  %s4 = inlined_call_operand.vmem [shape: f32[16,1024], index: 4, kind: output, shape index: {}]
  %s5 = sld [smem:[#allocation0]]
  $region72: #{gene_decoder_forward.1} parent=0
    _
  %s7 = ssub.s32 1, %s5
  %s8 = scalar_select 0, %s7, %s5
  $region1: #{gene_decoder_forward.1} parent=0
    #allocation2 [shape = 'u8[65536]{0}', space=vmem, size = 0x10000, scoped, tag = 'input window, operand 1']
    #allocation3 [shape = 's32[2]{0}', space=sflag, size = 0x8, scoped, tag = 'scoped memory for gene_decoder_forward.1']
    #allocation4 [shape = 'u8[65536]{0}', space=vmem, size = 0x10000, scoped, tag = 'output window, operand 0']
    %9 = vsyncpa [#allocation3], 0
    %s10 = scalar_lea.sflag [#allocation3], 1
    %11 = vsyncpa %s10, 0
    loop: start=0, step=1, limit=4
    $region2: #{gene_decoder_forward.1} parent=1 // loop_pre_header
      _
    $region3: #{gene_decoder_forward.1} parent=1 // loop_header
      %s13 = sphi 0, %s17
      %p14 = scmp.ge.s32.totalorder %s13, 4
      %s21 = sphi 0, %s21
      %s23 = sphi 0, %s21
      %s24 = sphi 0, %s23
      %s38 = sphi 0, %s24
      %s44 = sphi 0, %s46
      %s47 = sphi 0, %s44
      %s48 = sphi 0, %s47
      %s64 = sphi 0, %s48
      %s70 = sphi 0, %s72
      %s73 = sphi 0, %s70
      %s74 = sphi 0, %s73
      %s90 = sphi 0, %s74
      %s96 = sphi 0, %s98
      %s99 = sphi 0, %s96
      %s100 = sphi 0, %s99
      %s116 = sphi 0, %s100
      %s122 = sphi 0, %s124
      %s125 = sphi 0, %s122
      %s126 = sphi 0, %s125
      %s142 = sphi 0, %s126
    $region4: #{gene_decoder_forward.1} parent=1 // loop_header_branch
      %16 = sbr.rel (%p14) target = $region8
    $region5: #{gene_decoder_forward.1} parent=1 // loop_body
      %s18 = ssub.s32 %s13, 1
      %s19 = ssub.s32 %s13, 2
      %s20 = sadd.s32 %s13, 1
      %s22 = sadd.s32 %s21, 1
      %p25 = scmp.eq.s32.totalorder %s13, 1
      %p26 = scmp.ne.s32.totalorder %s21, %s23
      %p27 = scmp.eq.s32.totalorder %s13, 0
      %p28 = por %p26, %p27
      %p29 = scmp.ne.s32.totalorder %s21, %s23
      %p30 = scmp.eq.s32.totalorder %s18, 1
      %p31 = por %p29, %p30
      %p32 = scmp.ne.s32.totalorder %s23, %s24
      %p33 = scmp.eq.s32.totalorder %s18, 0
      %p34 = por %p32, %p33
      %p35 = scmp.ne.s32.totalorder %s23, %s24
      %p36 = scmp.eq.s32.totalorder %s19, 1
      %p37 = por %p35, %p36
      %p39 = scmp.ne.s32.totalorder %s24, %s38
      %p40 = scmp.eq.s32.totalorder %s19, 0
      %p41 = por %p39, %p40
      %s42 = ssub.s32 %s13, %s20
      %p43 = scmp.eq.s32.totalorder %s42, 0
      %s45 = sadd.s32 %s44, 1
      %s46 = scalar_select %p43, %s44, %s45
      %p49 = pneg %p43
      %p50 = scmp.eq.s32.totalorder %s13, 1
      %p51 = por %p49, %p50
      %p52 = scmp.ne.s32.totalorder %s44, %s47
      %p53 = scmp.eq.s32.totalorder %s13, 0
      %p54 = por %p52, %p53
      %p55 = scmp.ne.s32.totalorder %s44, %s47
      %p56 = scmp.eq.s32.totalorder %s18, 1
      %p57 = por %p55, %p56
      %p58 = scmp.ne.s32.totalorder %s47, %s48
      %p59 = scmp.eq.s32.totalorder %s18, 0
      %p60 = por %p58, %p59
      %p61 = scmp.ne.s32.totalorder %s47, %s48
      %p62 = scmp.eq.s32.totalorder %s19, 1
      %p63 = por %p61, %p62
      %p65 = scmp.ne.s32.totalorder %s48, %s64
      %p66 = scmp.eq.s32.totalorder %s19, 0
      %p67 = por %p65, %p66
      %s68 = ssub.s32 %s13, %s20
      %p69 = scmp.eq.s32.totalorder %s68, 0
      %s71 = sadd.s32 %s70, 1
      %s72 = scalar_select %p69, %s70, %s71
      %p75 = pneg %p69
      %p76 = scmp.eq.s32.totalorder %s13, 1
      %p77 = por %p75, %p76
      %p78 = scmp.ne.s32.totalorder %s70, %s73
      %p79 = scmp.eq.s32.totalorder %s13, 0
      %p80 = por %p78, %p79
      %p81 = scmp.ne.s32.totalorder %s70, %s73
      %p82 = scmp.eq.s32.totalorder %s18, 1
      %p83 = por %p81, %p82
      %p84 = scmp.ne.s32.totalorder %s73, %s74
      %p85 = scmp.eq.s32.totalorder %s18, 0
      %p86 = por %p84, %p85
      %p87 = scmp.ne.s32.totalorder %s73, %s74
      %p88 = scmp.eq.s32.totalorder %s19, 1
      %p89 = por %p87, %p88
      %p91 = scmp.ne.s32.totalorder %s74, %s90
      %p92 = scmp.eq.s32.totalorder %s19, 0
      %p93 = por %p91, %p92
      %s94 = ssub.s32 %s13, %s20
      %p95 = scmp.eq.s32.totalorder %s94, 0
      %s97 = sadd.s32 %s96, 1
      %s98 = scalar_select %p95, %s96, %s97
      %p101 = pneg %p95
      %p102 = scmp.eq.s32.totalorder %s13, 1
      %p103 = por %p101, %p102
      %p104 = scmp.ne.s32.totalorder %s96, %s99
      %p105 = scmp.eq.s32.totalorder %s13, 0
      %p106 = por %p104, %p105
      %p107 = scmp.ne.s32.totalorder %s96, %s99
      %p108 = scmp.eq.s32.totalorder %s18, 1
      %p109 = por %p107, %p108
      %p110 = scmp.ne.s32.totalorder %s99, %s100
      %p111 = scmp.eq.s32.totalorder %s18, 0
      %p112 = por %p110, %p111
      %p113 = scmp.ne.s32.totalorder %s99, %s100
      %p114 = scmp.eq.s32.totalorder %s19, 1
      %p115 = por %p113, %p114
      %p117 = scmp.ne.s32.totalorder %s100, %s116
      %p118 = scmp.eq.s32.totalorder %s19, 0
      %p119 = por %p117, %p118
      %s120 = ssub.s32 %s13, %s20
      %p121 = scmp.eq.s32.totalorder %s120, 0
      %s123 = sadd.s32 %s122, 1
      %s124 = scalar_select %p121, %s122, %s123
      %p127 = pneg %p121
      %p128 = scmp.eq.s32.totalorder %s13, 1
      %p129 = por %p127, %p128
      %p130 = scmp.ne.s32.totalorder %s122, %s125
      %p131 = scmp.eq.s32.totalorder %s13, 0
      %p132 = por %p130, %p131
      %p133 = scmp.ne.s32.totalorder %s122, %s125
      %p134 = scmp.eq.s32.totalorder %s18, 1
      %p135 = por %p133, %p134
      %p136 = scmp.ne.s32.totalorder %s125, %s126
      %p137 = scmp.eq.s32.totalorder %s18, 0
      %p138 = por %p136, %p137
      %p139 = scmp.ne.s32.totalorder %s125, %s126
      %p140 = scmp.eq.s32.totalorder %s19, 1
      %p141 = por %p139, %p140
      %p143 = scmp.ne.s32.totalorder %s126, %s142
      %p144 = scmp.eq.s32.totalorder %s19, 0
      %p145 = por %p143, %p144
      %p146 = scmp.le.s32.totalorder 1, %s13
      %p147 = scmp.lt.s32.totalorder %s13, 3
      %p148 = pnand %p146, %p147
      %p149 = pneg %p148
      // Predicated region
      $region9: #{gene_decoder_forward.1} parent=5 // pred_check
        _
      $region10: #{gene_decoder_forward.1} parent=5 // pred_check_branch
        %151 = sbr.rel (%p148) target = $region12
      $region11: #{gene_decoder_forward.1} parent=5 // pred_region
        %s152 = ssub.s32 %s13, 1
        // Predicated region
        $region13: #{gene_decoder_forward.1} parent=11 // pred_check
          %p153 = pneg %p34
        $region14: #{gene_decoder_forward.1} parent=11 // pred_check_branch
          %155 = sbr.rel (%p153) target = $region16
        $region15: #{gene_decoder_forward.1} parent=11 // pred_region
          _
        $region16: #{gene_decoder_forward.1} parent=11 // pred_fallthru
          _
      $region12: #{gene_decoder_forward.1} parent=5 // pred_fallthru
        _
      %p156 = scmp.lt.s32.totalorder %s13, 2
      // Predicated region
      $region17: #{gene_decoder_forward.1} parent=5 // pred_check
        %p157 = pneg %p156
      $region18: #{gene_decoder_forward.1} parent=5 // pred_check_branch
        %159 = sbr.rel (%p157) target = $region20
      $region19: #{gene_decoder_forward.1} parent=5 // pred_region
        // Predicated region
        $region21: #{gene_decoder_forward.1} parent=19 // pred_check
          %p160 = pneg %p54
        $region22: #{gene_decoder_forward.1} parent=19 // pred_check_branch
          %162 = sbr.rel (%p160) target = $region24
        $region23: #{gene_decoder_forward.1} parent=19 // pred_region
          %s163 = sand.u32 %s44, 1
          %s164 = scalar_lea.sflag [#allocation3], %s163
          %s165 = sand.u32 %s44, 1
          %s166 = smul.addr %s165, 64
          %s167 = scalar_lea.vmem [#allocation2], %s166
          %s169 = ssub.s32 1024, 1024
          %170 = vsyncadd %s164, %s169
          %s171 = smul.addr %s13, 8
          %s172 = smul.addr %s171, 128
          %s173 = scalar_lea.hbm %s1, %s172
          %s174 = sshll.u32 %s167, 4
          %s175 = int_to_ptr.vmem [resolvable:$true] %s174
          %180 = dma.hbm_to_vmem [thread:$0]  %s173, 1024, %s175, %s164, 512, 512, 32
        $region24: #{gene_decoder_forward.1} parent=19 // pred_fallthru
          _
        // Predicated region
        $region25: #{gene_decoder_forward.1} parent=19 // pred_check
          %p181 = pneg %p80
        $region26: #{gene_decoder_forward.1} parent=19 // pred_check_branch
          %183 = sbr.rel (%p181) target = $region28
        $region27: #{gene_decoder_forward.1} parent=19 // pred_region
          %p184 = scmp.lt.s32.totalorder %s13, 1
          %s185 = scalar_select %p184, %s13, 1
          %s186 = smul.addr %s185, 4
          %s187 = scalar_lea.vmem %s2, %s186
        $region28: #{gene_decoder_forward.1} parent=19 // pred_fallthru
          _
        // Predicated region
        $region29: #{gene_decoder_forward.1} parent=19 // pred_check
          %p188 = pneg %p106
        $region30: #{gene_decoder_forward.1} parent=19 // pred_check_branch
          %190 = sbr.rel (%p188) target = $region32
        $region31: #{gene_decoder_forward.1} parent=19 // pred_region
          %p191 = scmp.lt.s32.totalorder %s13, 1
          %s192 = scalar_select %p191, %s13, 1
          %s193 = smul.addr %s192, 4
          %s194 = scalar_lea.vmem %s3, %s193
        $region32: #{gene_decoder_forward.1} parent=19 // pred_fallthru
          _
      $region20: #{gene_decoder_forward.1} parent=5 // pred_fallthru
        _
      %p195 = scmp.le.s32.totalorder 1, %s13
      %p196 = scmp.lt.s32.totalorder %s13, 3
      %p197 = pnand %p195, %p196
      %p198 = pneg %p197
      // Predicated region
      $region33: #{gene_decoder_forward.1} parent=5 // pred_check
        _
      $region34: #{gene_decoder_forward.1} parent=5 // pred_check_branch
        %200 = sbr.rel (%p197) target = $region36
      $region35: #{gene_decoder_forward.1} parent=5 // pred_region
        %s201 = ssub.s32 %s13, 1
        %s202 = sand.u32 %s47, 1
        %s203 = scalar_lea.sflag [#allocation3], %s202
        %s204 = sand.u32 %s47, 1
        %s205 = smul.addr %s204, 64
        %s206 = scalar_lea.vmem [#allocation2], %s205
        // Predicated region
        $region37: #{gene_decoder_forward.1} parent=35 // pred_check
          %p207 = pneg %p60
        $region38: #{gene_decoder_forward.1} parent=35 // pred_check_branch
          %209 = sbr.rel (%p207) target = $region40
        $region39: #{gene_decoder_forward.1} parent=35 // pred_region
          %210 = dma.done %s203, 1024
        $region40: #{gene_decoder_forward.1} parent=35 // pred_fallthru
          _
        %p211 = pneg %p34
        %p212 = pneg %p31
        %s213 = sand.u32 %s47, 1
        %s214 = scalar_lea.sflag [#allocation3], %s213
        %s215 = sand.u32 %s47, 1
        %s216 = smul.addr %s215, 64
        %s217 = scalar_lea.vmem [#allocation2], %s216
        %p218 = pneg %p60
        %p219 = pneg %p57
        %p220 = scmp.lt.s32.totalorder %s18, 1
        %s221 = scalar_select %p220, %s18, 1
        %s222 = smul.addr %s221, 4
        %s223 = scalar_lea.vmem %s2, %s222
        %p224 = pneg %p86
        %p225 = pneg %p83
        %p226 = scmp.lt.s32.totalorder %s18, 1
        %s227 = scalar_select %p226, %s18, 1
        %s228 = smul.addr %s227, 4
        %s229 = scalar_lea.vmem %s3, %s228
        %p230 = pneg %p112
        %p231 = pneg %p109
        %p232 = pneg %p138
        %p233 = pneg %p135
        %s234 = sand.u32 %s125, 1
        %s235 = sand.u32 %s125, 1
        %s236 = smul.addr %s235, 64
        %s237 = scalar_lea.vmem [#allocation4], %s236
        %p238 = scmp.lt.s32.totalorder %s18, 1
        %s239 = scalar_select %p238, %s18, 1
        %s240 = smul.addr %s239, 4
        %s241 = scalar_lea.vmem %s2, %s240
        %p242 = scmp.lt.s32.totalorder %s18, 1
        %s243 = scalar_select %p242, %s18, 1
        %s244 = smul.addr %s243, 4
        %s245 = scalar_lea.vmem %s3, %s244
        %s246 = smul.u32 4, %s18
        %v248 = vld [vmem:[%s206] sm:$0xff]
        %v249 = vld [vmem:[%s206 + $0x8] sm:$0xff]
        %v250 = vld [vmem:[%s206 + $0x10] sm:$0xff]
        %v251 = vld [vmem:[%s206 + $0x18] sm:$0xff]
        %v252 = vld [vmem:[%s206 + $0x20] sm:$0xff]
        %v253 = vld [vmem:[%s206 + $0x28] sm:$0xff]
        %v254 = vld [vmem:[%s206 + $0x30] sm:$0xff]
        %v255 = vld [vmem:[%s206 + $0x38] sm:$0xff]
        %v256 = vunpack.c.l.s8.bf16 %v248
        %v257 = vunpack.c.l.s8.bf16 %v249
        %v258 = vunpack.c.l.s8.bf16 %v250
        %v259 = vunpack.c.l.s8.bf16 %v251
        %v260 = vunpack.c.h.s8.bf16 %v248
        %v261 = vunpack.c.h.s8.bf16 %v249
        %v262 = vunpack.c.h.s8.bf16 %v250
        %v263 = vunpack.c.h.s8.bf16 %v251
        %v264 = vunpack.c.l.s8.bf16 %v252
        %v265 = vunpack.c.l.s8.bf16 %v253
        %v266 = vunpack.c.l.s8.bf16 %v254
        %v267 = vunpack.c.l.s8.bf16 %v255
        %v268 = vunpack.c.h.s8.bf16 %v252
        %v269 = vunpack.c.h.s8.bf16 %v253
        %v270 = vunpack.c.h.s8.bf16 %v254
        %v271 = vunpack.c.h.s8.bf16 %v255
        %v272 = vld [vmem:[%s0] sm:$0xf]
        %v273 = vld [vmem:[%s0 + $0x4] sm:$0xf]
        %v276 = vunpack.c.l.b16 %v272
        %v277 = vunpack.c.l.b16 %v273
        %v278 = vpack.c.b16 %v277, %v276
        %vm279 = vcmask 523264
        %v281 = vsel %vm279, %v278, 0
        %283 = vmatprep.subr.bf16.mxu0 %v257
        %284 = vmatpush1.bf16.msra.mxu0 %v256
        %285 = vmatprep.subr.bf16.mxu0 %v261
        %286 = vmatpush1.bf16.msra.mxu0 %v260
        %287 = vmatprep.subr.bf16.mxu0 %v265
        %288 = vmatpush1.bf16.msra.mxu0 %v264
        %289 = vmatprep.subr.bf16.mxu0 %v269
        %290 = vmatpush1.bf16.msra.mxu0 %v268
        %291 = vmatprep.subr.bf16.mxu0 0
        %292 = vmatpush1.bf16.msra.mxu0 0
        %293 = vmatprep.subr.bf16.mxu0 0
        %294 = vmatpush1.bf16.msra.mxu0 0
        %295 = vmatprep.subr.bf16.mxu0 0
        %296 = vmatpush1.bf16.msra.mxu0 0
        %297 = vmatprep.subr.bf16.mxu0 0
        %298 = vmatpush1.bf16.msra.mxu0 0
        %299 = vmatprep.subr.bf16.mxu0 0
        %300 = vmatpush1.bf16.msra.mxu0 0
        %301 = vmatprep.subr.bf16.mxu0 0
        %302 = vmatpush1.bf16.msra.mxu0 0
        %303 = vmatprep.subr.bf16.mxu0 0
        %304 = vmatpush1.bf16.msra.mxu0 0
        %305 = vmatprep.subr.bf16.mxu0 0
        %306 = vmatpush1.bf16.msra.mxu0 0
        %307 = vmatprep.subr.bf16.mxu0 0
        %308 = vmatpush1.bf16.msra.mxu0 0
        %309 = vmatprep.subr.bf16.mxu0 0
        %310 = vmatpush1.bf16.msra.mxu0 0
        %311 = vmatprep.subr.bf16.mxu0 0
        %312 = vmatpush1.bf16.msra.mxu0 0
        %313 = vmatprep.subr.bf16.mxu0 0
        %314 = vmatpush1.bf16.msra.mxu0 0
        %315 = vmatprep.mubr.bf16.mxu0 0
        %316 = vmatmul.mubr.bf16.gmra.mrb[0].mxu0 %v281
        %v317 = vpop.f32.mrb[0].mxu0
        %v318 = vadd.f32 0.0, %v317
        %v319 = vpop.f32.mrb[0].mxu0
        %v320 = vadd.f32 0.0, %v319
        %v321 = vpop.f32.mrb[0].mxu0
        %v322 = vadd.f32 0.0, %v321
        %v323 = vpop.f32.mrb[0].mxu0
        %v324 = vadd.f32 0.0, %v323
        %325 = vdwg.mxu0
        %326 = vmatprep.subr.bf16.mxu0 %v259
        %327 = vmatpush1.bf16.msra.mxu0 %v258
        %328 = vmatprep.subr.bf16.mxu0 %v263
        %329 = vmatpush1.bf16.msra.mxu0 %v262
        %330 = vmatprep.subr.bf16.mxu0 %v267
        %331 = vmatpush1.bf16.msra.mxu0 %v266
        %332 = vmatprep.subr.bf16.mxu0 %v271
        %333 = vmatpush1.bf16.msra.mxu0 %v270
        %334 = vmatprep.subr.bf16.mxu0 0
        %335 = vmatpush1.bf16.msra.mxu0 0
        %336 = vmatprep.subr.bf16.mxu0 0
        %337 = vmatpush1.bf16.msra.mxu0 0
        %338 = vmatprep.subr.bf16.mxu0 0
        %339 = vmatpush1.bf16.msra.mxu0 0
        %340 = vmatprep.subr.bf16.mxu0 0
        %341 = vmatpush1.bf16.msra.mxu0 0
        %342 = vmatprep.subr.bf16.mxu0 0
        %343 = vmatpush1.bf16.msra.mxu0 0
        %344 = vmatprep.subr.bf16.mxu0 0
        %345 = vmatpush1.bf16.msra.mxu0 0
        %346 = vmatprep.subr.bf16.mxu0 0
        %347 = vmatpush1.bf16.msra.mxu0 0
        %348 = vmatprep.subr.bf16.mxu0 0
        %349 = vmatpush1.bf16.msra.mxu0 0
        %350 = vmatprep.subr.bf16.mxu0 0
        %351 = vmatpush1.bf16.msra.mxu0 0
        %352 = vmatprep.subr.bf16.mxu0 0
        %353 = vmatpush1.bf16.msra.mxu0 0
        %354 = vmatprep.subr.bf16.mxu0 0
        %355 = vmatpush1.bf16.msra.mxu0 0
        %356 = vmatprep.subr.bf16.mxu0 0
        %357 = vmatpush1.bf16.msra.mxu0 0
        %358 = vmatprep.mubr.bf16.mxu0 0
        %359 = vmatmul.mubr.bf16.gmra.mrb[0].mxu0 %v281
        %v360 = vpop.f32.mrb[0].mxu0
        %v361 = vadd.f32 0.0, %v360
        %v362 = vpop.f32.mrb[0].mxu0
        %v363 = vadd.f32 0.0, %v362
        %v364 = vpop.f32.mrb[0].mxu0
        %v365 = vadd.f32 0.0, %v364
        %v366 = vpop.f32.mrb[0].mxu0
        %v367 = vadd.f32 0.0, %v366
        %368 = vdwg.mxu0
        %v369 = vld [vmem:[%s241] sm:$0xf]
        %v371 = vlaneseq
        %v372 = vshrl.u32 %v371, 7
        %v373 = vsub.s32 0, %v372
        %v374 = vrot.slane %v369, %v373
        %v375 = vlaneseq
        %v376 = vshrl.u32 %v375, 7
        %v377 = vsub.s32 1, %v376
        %v378 = vrot.slane %v369, %v377
        %v379 = vlaneseq
        %v380 = vshrl.u32 %v379, 7
        %v381 = vsub.s32 2, %v380
        %v382 = vrot.slane %v369, %v381
        %v383 = vlaneseq
        %v384 = vshrl.u32 %v383, 7
        %v385 = vsub.s32 3, %v384
        %v386 = vrot.slane %v369, %v385
        %v391 = vmul.f32 %v318, %v374
        %v392 = vmul.f32 %v320, %v378
        %v393 = vmul.f32 %v361, %v382
        %v394 = vmul.f32 %v363, %v386
        %v395 = vmul.f32 %v322, %v374
        %v396 = vmul.f32 %v324, %v378
        %v397 = vmul.f32 %v365, %v382
        %v398 = vmul.f32 %v367, %v386
        %v399 = vld [vmem:[%s245] sm:$0xf]
        %v401 = vlaneseq
        %v402 = vshrl.u32 %v401, 7
        %v403 = vsub.s32 0, %v402
        %v404 = vrot.slane %v399, %v403
        %v405 = vlaneseq
        %v406 = vshrl.u32 %v405, 7
        %v407 = vsub.s32 1, %v406
        %v408 = vrot.slane %v399, %v407
        %v409 = vlaneseq
        %v410 = vshrl.u32 %v409, 7
        %v411 = vsub.s32 2, %v410
        %v412 = vrot.slane %v399, %v411
        %v413 = vlaneseq
        %v414 = vshrl.u32 %v413, 7
        %v415 = vsub.s32 3, %v414
        %v416 = vrot.slane %v399, %v415
        %v421 = vadd.f32 %v391, %v404
        %v422 = vadd.f32 %v392, %v408
        %v423 = vadd.f32 %v393, %v412
        %v424 = vadd.f32 %v394, %v416
        %v425 = vadd.f32 %v395, %v404
        %v426 = vadd.f32 %v396, %v408
        %v427 = vadd.f32 %v397, %v412
        %v428 = vadd.f32 %v398, %v416
        %429 = vst [vmem:[%s237] sm:$0xff] %v421
        %430 = vst [vmem:[%s237 + $0x8] sm:$0xff] %v422
        %431 = vst [vmem:[%s237 + $0x10] sm:$0xff] %v423
        %432 = vst [vmem:[%s237 + $0x18] sm:$0xff] %v424
        %433 = vst [vmem:[%s237 + $0x20] sm:$0xff] %v425
        %434 = vst [vmem:[%s237 + $0x28] sm:$0xff] %v426
        %435 = vst [vmem:[%s237 + $0x30] sm:$0xff] %v427
        %436 = vst [vmem:[%s237 + $0x38] sm:$0xff] %v428
        %s437 = sand.u32 %s125, 1
        %s438 = sand.u32 %s125, 1
        %s439 = smul.addr %s438, 64
        %s440 = scalar_lea.vmem [#allocation4], %s439
        // Predicated region
        $region41: #{gene_decoder_forward.1} parent=35 // pred_check
          %p441 = pneg %p135
        $region42: #{gene_decoder_forward.1} parent=35 // pred_check_branch
          %443 = sbr.rel (%p441) target = $region44
        $region43: #{gene_decoder_forward.1} parent=35 // pred_region
          %s444 = smul.u32 4, %s18
          %s445 = smul.addr %s444, 8
          %s446 = scalar_lea.vmem %s4, %s445
          // Predicated region
          $region45: #{gene_decoder_forward.1} parent=43 // pred_check
            _
          $region46: #{gene_decoder_forward.1} parent=43 // pred_check_branch
            %448 = sbr.rel (0) target = $region48
          $region47: #{gene_decoder_forward.1} parent=43 // pred_region
            // Predicated region
            $region49: #{gene_decoder_forward.1} parent=47 // pred_check
              _
            $region50: #{gene_decoder_forward.1} parent=47 // pred_check_branch
              %450 = sbr.rel (0) target = $region52
            $region51: #{gene_decoder_forward.1} parent=47 // pred_region
              loop: start=0, step=1, limit=1
              $region53: #{gene_decoder_forward.1} parent=51 // loop_pre_header
                _
              $region54: #{gene_decoder_forward.1} parent=51 // loop_header
                %s452 = sphi 0, %s456
                %p453 = scmp.ge.s32.totalorder %s452, 1
                %s457 = sphi %s440, %s440
                %s458 = sphi %s446, %s446
              $region55: #{gene_decoder_forward.1} parent=51 // loop_header_branch
                %455 = sbr.rel (%p453) target = $region59
              $region56: #{gene_decoder_forward.1} parent=51 // loop_body
                %v459 = vld [vmem:[%s457] sm:$0xff]
                %460 = vst [vmem:[%s458] sm:$0xff] %v459
                %v461 = vld [vmem:[%s457 + $0x8] sm:$0xff]
                %462 = vst [vmem:[%s458 + $0x8] sm:$0xff] %v461
                %v463 = vld [vmem:[%s457 + $0x10] sm:$0xff]
                %464 = vst [vmem:[%s458 + $0x10] sm:$0xff] %v463
                %v465 = vld [vmem:[%s457 + $0x18] sm:$0xff]
                %466 = vst [vmem:[%s458 + $0x18] sm:$0xff] %v465
                %v467 = vld [vmem:[%s457 + $0x20] sm:$0xff]
                %468 = vst [vmem:[%s458 + $0x40] sm:$0xff] %v467
                %v469 = vld [vmem:[%s457 + $0x28] sm:$0xff]
                %470 = vst [vmem:[%s458 + $0x48] sm:$0xff] %v469
                %v471 = vld [vmem:[%s457 + $0x30] sm:$0xff]
                %472 = vst [vmem:[%s458 + $0x50] sm:$0xff] %v471
                %v473 = vld [vmem:[%s457 + $0x38] sm:$0xff]
                %474 = vst [vmem:[%s458 + $0x58] sm:$0xff] %v473
              $region57: #{gene_decoder_forward.1} parent=51 // loop_footer
                %s456 = sadd.s32 1, %s452
              $region58: #{gene_decoder_forward.1} parent=51 // loop_footer_branch
                %451 = sbr.rel target = $region54
              $region59: #{gene_decoder_forward.1} parent=51 // loop_exit
                _
            $region52: #{gene_decoder_forward.1} parent=47 // pred_fallthru
              _
            // Predicated region
            $region60: #{gene_decoder_forward.1} parent=47 // pred_check
              _
            $region61: #{gene_decoder_forward.1} parent=47 // pred_check_branch
              %476 = sbr.rel target = $region63
            $region62: #{gene_decoder_forward.1} parent=47 // pred_region
              _
            $region63: #{gene_decoder_forward.1} parent=47 // pred_fallthru
              _
          $region48: #{gene_decoder_forward.1} parent=43 // pred_fallthru
            _
          %477 = vnop
        $region44: #{gene_decoder_forward.1} parent=35 // pred_fallthru
          _
      $region36: #{gene_decoder_forward.1} parent=5 // pred_fallthru
        _
      %p478 = scmp.le.s32.totalorder 2, %s13
      // Predicated region
      $region64: #{gene_decoder_forward.1} parent=5 // pred_check
        %p479 = pneg %p478
      $region65: #{gene_decoder_forward.1} parent=5 // pred_check_branch
        %481 = sbr.rel (%p479) target = $region67
      $region66: #{gene_decoder_forward.1} parent=5 // pred_region
        %s482 = ssub.s32 %s13, 2
        // Predicated region
        $region68: #{gene_decoder_forward.1} parent=66 // pred_check
          %p483 = pneg %p141
        $region69: #{gene_decoder_forward.1} parent=66 // pred_check_branch
          %485 = sbr.rel (%p483) target = $region71
        $region70: #{gene_decoder_forward.1} parent=66 // pred_region
          %s486 = sand.u32 %s126, 1
          %s487 = sand.u32 %s126, 1
          %s488 = smul.addr %s487, 64
          %s489 = scalar_lea.vmem [#allocation4], %s488
        $region71: #{gene_decoder_forward.1} parent=66 // pred_fallthru
          _
      $region67: #{gene_decoder_forward.1} parent=5 // pred_fallthru
        _
    $region6: #{gene_decoder_forward.1} parent=1 // loop_footer
      %s17 = sadd.s32 1, %s13
    $region7: #{gene_decoder_forward.1} parent=1 // loop_footer_branch
      %12 = sbr.rel target = $region3
    $region8: #{gene_decoder_forward.1} parent=1 // loop_exit
      _
    %490 = vsyncpa [#allocation3], 1
    %s491 = scalar_lea.sflag [#allocation3], 1
    %492 = vsyncpa %s491, 1

</llo_original>
